<compile_context>
chip_gen: v7x
topology: tpu7x:2x2x1
jax: 0.10.0
libtpu: 0.0.40
codegen_flags: <defaults>
</compile_context>

<pallas_src>
import functools

import jax
import jax.numpy as jnp
from jax.experimental import pallas as pl
from jax.experimental.pallas import tpu as pltpu


# ---------------------------------------------------------------------------
# WordRep: embedding lookup (one-hot MXU gather) + inverted dropout
# ---------------------------------------------------------------------------
def _embed_kernel(ids_ref, table_ref, *rest, pack, has_dropout,
                  drop_threshold, drop_scale):
    if has_dropout:
        bits_ref, out_ref = rest
    else:
        (out_ref,) = rest

    ids = ids_ref[...]                 # (R, pack) int32
    table = table_ref[...]             # (V, D)
    v_size = table.shape[0]
    rows = ids.shape[0]

    lane_v = jax.lax.broadcasted_iota(jnp.int32, (rows, v_size), 1)
    chunks = []
    for j in range(pack):
        # one-hot gather on the MXU; ids outside [0, V) give an all-zero row.
        onehot = (lane_v == ids[:, j:j + 1]).astype(table.dtype)   # (R, V)
        chunks.append(jnp.dot(onehot, table,
                              preferred_element_type=jnp.float32))  # (R, D)
    emb = chunks[0] if pack == 1 else jnp.concatenate(chunks, axis=-1)

    if has_dropout:
        keep = bits_ref[...] >= jnp.uint32(drop_threshold)
        emb = jnp.where(keep, emb * jnp.float32(drop_scale), jnp.float32(0.0))

    out_ref[...] = emb.astype(out_ref.dtype)


def word_rep_forward(ids, table, *, dropout_p=0.0, rng_key=None,
                     tokens_per_block=512):
    """embed(ids) -> dropout, returns (B, T, D)."""
    b, t = ids.shape
    v, d = table.shape
    n = b * t

    pack = 128 // d if (d <= 128 and 128 % d == 0) else 1
    quantum = 8 * pack                      # sublane multiple for the row dim
    tpb = max(tokens_per_block, quantum)
    tpb = ((tpb + quantum - 1) // quantum) * quantum
    n_pad = ((n + tpb - 1) // tpb) * tpb

    ids_flat = jnp.pad(ids.reshape(-1).astype(jnp.int32), (0, n_pad - n))
    ids2d = ids_flat.reshape(n_pad // pack, pack)
    rows_per_block = tpb // pack
    grid = (n_pad // tpb,)

    has_dropout = float(dropout_p) > 0.0
    drop_threshold = min(int(float(dropout_p) * (2 ** 32)), 2 ** 32 - 1)
    drop_scale = 1.0 / (1.0 - float(dropout_p)) if has_dropout else 1.0

    args = [ids2d, table]
    in_specs = [
        pl.BlockSpec((rows_per_block, pack), lambda i: (i, 0)),
        # TODO(synk): for production vocab sizes (e.g. 30K x 768, or any v7x
        # deployment with 64 MiB VMEM) keep the table in HBM
        # (memory_space=pl.ANY) and DMA-gather rows instead of holding the
        # whole table resident in VMEM.
        pl.BlockSpec((v, d), lambda i: (0, 0)),
    ]
    if has_dropout:
        if rng_key is None:
            rng_key = jax.random.PRNGKey(0)
        bits = jax.random.bits(rng_key, (n_pad // pack, pack * d),
                               dtype=jnp.uint32)
        args.append(bits)
        in_specs.append(pl.BlockSpec((rows_per_block, pack * d),
                                     lambda i: (i, 0)))

    kernel = functools.partial(_embed_kernel, pack=pack,
                               has_dropout=has_dropout,
                               drop_threshold=drop_threshold,
                               drop_scale=drop_scale)

    out = pl.pallas_call(
        kernel,
        out_shape=jax.ShapeDtypeStruct((n_pad // pack, pack * d), table.dtype),
        grid=grid,
        in_specs=in_specs,
        out_specs=pl.BlockSpec((rows_per_block, pack * d), lambda i: (i, 0)),
        compiler_params=pltpu.CompilerParams(
            dimension_semantics=("parallel",),
            vmem_limit_bytes=32 * 1024 * 1024),
    )(*args)

    return out.reshape(n_pad, d)[:n].reshape(b, t, d)


# ---------------------------------------------------------------------------
# Dilated causal conv1d (+bias, ReLU, dropout, residual) as a matmul kernel.
# Also covers the 1x1 downsample conv and the `lin` + ReLU layer (k=1).
# ---------------------------------------------------------------------------
def _temporal_matmul_kernel(x_ref, w_ref, b_ref, *rest, dilation, apply_relu,
                            has_dropout, drop_threshold, drop_scale,
                            has_residual):
    idx = 0
    bits_ref = None
    res_ref = None
    if has_dropout:
        bits_ref = rest[idx]; idx += 1
    if has_residual:
        res_ref = rest[idx]; idx += 1
    out_ref = rest[idx]

    taps = w_ref.shape[0]
    out_len = out_ref.shape[1]
    c_out = out_ref.shape[2]

    acc = jnp.zeros((out_len, c_out), jnp.float32) + b_ref[...]
    for j in range(taps):
        xj = x_ref[0, j * dilation: j * dilation + out_len, :]   # (T, C_in)
        acc = acc + jnp.dot(xj, w_ref[j],
                            preferred_element_type=jnp.float32)

    h = acc
    if apply_relu:
        h = jnp.maximum(h, 0.0)
    if has_dropout:
        keep = bits_ref[0] >= jnp.uint32(drop_threshold)
        h = jnp.where(keep, h * jnp.float32(drop_scale), jnp.float32(0.0))
    if has_residual:
        h = jnp.maximum(h + res_ref[0].astype(jnp.float32), 0.0)

    out_ref[0] = h.astype(out_ref.dtype)


def temporal_layer(x, w, bias, *, dilation=1, apply_relu=True,
                   dropout_p=0.0, rng_key=None, residual=None):
    """x: (B, T, C_in); w: (k, C_in, C_out); bias: (C_out,)."""
    b, t, c_in = x.shape
    k, _, c_out = w.shape
    pad = (k - 1) * dilation
    x_pad = jnp.pad(x, ((0, 0), (pad, 0), (0, 0)))       # left pad == chomp
    t_pad = t + pad

    has_dropout = float(dropout_p) > 0.0
    has_residual = residual is not None
    drop_threshold = min(int(float(dropout_p) * (2 ** 32)), 2 ** 32 - 1)
    drop_scale = 1.0 / (1.0 - float(dropout_p)) if has_dropout else 1.0

    args = [x_pad, w, bias.reshape(1, c_out)]
    in_specs = [
        pl.BlockSpec((1, t_pad, c_in), lambda i: (i, 0, 0)),
        pl.BlockSpec((k, c_in, c_out), lambda i: (0, 0, 0)),
        pl.BlockSpec((1, c_out), lambda i: (0, 0)),
    ]
    if has_dropout:
        if rng_key is None:
            rng_key = jax.random.PRNGKey(0)
        bits = jax.random.bits(rng_key, (b, t, c_out), dtype=jnp.uint32)
        args.append(bits)
        in_specs.append(pl.BlockSpec((1, t, c_out), lambda i: (i, 0, 0)))
    if has_residual:
        args.append(residual)
        in_specs.append(pl.BlockSpec((1, t, c_out), lambda i: (i, 0, 0)))

    kernel = functools.partial(_temporal_matmul_kernel, dilation=dilation,
                               apply_relu=apply_relu, has_dropout=has_dropout,
                               drop_threshold=drop_threshold,
                               drop_scale=drop_scale,
                               has_residual=has_residual)

    return pl.pallas_call(
        kernel,
        out_shape=jax.ShapeDtypeStruct((b, t, c_out), jnp.float32),
        grid=(b,),
        in_specs=in_specs,
        out_specs=pl.BlockSpec((1, t, c_out), lambda i: (i, 0, 0)),
        compiler_params=pltpu.CompilerParams(
            dimension_semantics=("parallel",),
            vmem_limit_bytes=32 * 1024 * 1024),
    )(*args)


# ---------------------------------------------------------------------------
# OutputLayer: per-label attention + logits + BCE-with-logits loss
# ---------------------------------------------------------------------------
def _output_layer_kernel(x_ref, u_t_ref, wf_t_ref, fb_ref, target_ref,
                         logits_ref, loss_ref, *, label_smoothing,
                         smooth_alpha):
    b_count = x_ref.shape[0]
    y_count = fb_ref.shape[1]

    u_t = u_t_ref[...]          # (P, Y)  == U.weight^T
    wf_t = wf_t_ref[...]        # (P, Y)  == final.weight^T
    fb = fb_ref[...]            # (1, Y)

    rows = []
    for bi in range(b_count):
        xb = x_ref[bi]                                                # (T, P)
        att = jnp.dot(xb, u_t, preferred_element_type=jnp.float32)    # (T, Y)
        att = att - jnp.max(att, axis=0, keepdims=True)
        e = jnp.exp(att)
        alpha = e / jnp.sum(e, axis=0, keepdims=True)                 # softmax over T
        s = jnp.dot(xb, wf_t, preferred_element_type=jnp.float32)     # (T, Y)
        rows.append(jnp.sum(alpha * s, axis=0, keepdims=True) + fb)   # (1, Y)

    logits = rows[0] if b_count == 1 else jnp.concatenate(rows, axis=0)
    logits_ref[...] = logits.astype(logits_ref.dtype)

    tgt = target_ref[...].astype(jnp.float32)
    if label_smoothing:
        tgt = tgt * (1.0 - smooth_alpha) + smooth_alpha / y_count

    z = logits
    per = (jnp.maximum(z, 0.0) - z * tgt
           + jnp.log(1.0 + jnp.exp(-jnp.abs(z))))        # stable BCE w/ logits
    total = jnp.sum(jnp.sum(per, axis=1, keepdims=True), axis=0, keepdims=True)
    loss_ref[...] = total * jnp.float32(1.0 / (b_count * y_count))


def output_layer_forward(x, target, u_t, wf_t, final_bias, *,
                         label_smoothing=False, smooth_alpha=0.1):
    b, _, _ = x.shape
    y = u_t.shape[1]
    kernel = functools.partial(_output_layer_kernel,
                               label_smoothing=bool(label_smoothing),
                               smooth_alpha=float(smooth_alpha))
    logits, loss = pl.pallas_call(
        kernel,
        out_shape=(jax.ShapeDtypeStruct((b, y), jnp.float32),
                   jax.ShapeDtypeStruct((1, 1), jnp.float32)),
    )(x, u_t, wf_t, final_bias.reshape(1, y), target)
    return logits, loss[0, 0]


# ---------------------------------------------------------------------------
# Full DCAN forward
# ---------------------------------------------------------------------------
def dcan_forward(data, target, params, *, dropout_p=0.0, rng_key=None,
                 label_smoothing=False, smooth_alpha=0.1):
    if rng_key is None:
        rng_key = jax.random.PRNGKey(0)
    n_blocks = len(params["tcn"])
    keys = jax.random.split(rng_key, 1 + 2 * n_blocks)

    h = word_rep_forward(data, params["embed"], dropout_p=dropout_p,
                         rng_key=keys[0])

    for i, blk in enumerate(params["tcn"]):
        dilation = 2 ** i
        k1, k2 = keys[1 + 2 * i], keys[2 + 2 * i]
        h1 = temporal_layer(h, blk["w1"], blk["b1"], dilation=dilation,
                            apply_relu=True, dropout_p=dropout_p, rng_key=k1)
        if blk["wd"] is not None:
            res = temporal_layer(h, blk["wd"], blk["bd"], dilation=1,
                                 apply_relu=False)
        else:
            res = h
        h = temporal_layer(h1, blk["w2"], blk["b2"], dilation=dilation,
                           apply_relu=True, dropout_p=dropout_p, rng_key=k2,
                           residual=res)

    h = temporal_layer(h, params["lin_w"], params["lin_b"], dilation=1,
                       apply_relu=True)

    return output_layer_forward(h, target, params["u_t"], params["wf_t"],
                                params["fb"], label_smoothing=label_smoothing,
                                smooth_alpha=smooth_alpha)


# ---------------------------------------------------------------------------
# Pure-JAX reference (dropout disabled) for correctness checking
# ---------------------------------------------------------------------------
def _ref_causal_conv(h, w, bias, dilation):
    k = w.shape[0]
    t = h.shape[1]
    pad = (k - 1) * dilation
    hp = jnp.pad(h, ((0, 0), (pad, 0), (0, 0)))
    acc = bias.reshape(1, 1, -1)
    for j in range(k):
        acc = acc + jnp.einsum("btc,co->bto",
                               hp[:, j * dilation: j * dilation + t, :], w[j],
                               precision=jax.lax.Precision.HIGHEST)
    return acc


def reference_forward(data, target, params, *, label_smoothing=False,
                      smooth_alpha=0.1):
    h = jnp.take(params["embed"], data, axis=0)
    for i, blk in enumerate(params["tcn"]):
        d = 2 ** i
        a1 = jax.nn.relu(_ref_causal_conv(h, blk["w1"], blk["b1"], d))
        a2 = jax.nn.relu(_ref_causal_conv(a1, blk["w2"], blk["b2"], d))
        res = h if blk["wd"] is None else _ref_causal_conv(h, blk["wd"],
                                                           blk["bd"], 1)
        h = jax.nn.relu(a2 + res)
    h = jax.nn.relu(_ref_causal_conv(h, params["lin_w"], params["lin_b"], 1))

    u = params["u_t"].T
    wf = params["wf_t"].T
    fb = params["fb"]
    att = jnp.einsum("yp,btp->byt", u, h, precision=jax.lax.Precision.HIGHEST)
    alpha = jax.nn.softmax(att, axis=2)
    m = jnp.einsum("byt,btp->byp", alpha, h,
                   precision=jax.lax.Precision.HIGHEST)
    logits = jnp.sum(wf[None, :, :] * m, axis=2) + fb[None, :]

    tgt = target
    if label_smoothing:
        tgt = tgt * (1.0 - smooth_alpha) + smooth_alpha / fb.shape[0]
    per = (jnp.maximum(logits, 0.0) - logits * tgt
           + jnp.log1p(jnp.exp(-jnp.abs(logits))))
    return logits, jnp.mean(per)


# ---------------------------------------------------------------------------
# Parameter construction (forward-only demo; xavier-style scales)
# ---------------------------------------------------------------------------
def make_params(key, *, vocab, embed_size, nhid, levels, kernel_size, nproj,
                y_labels):
    keys = iter(jax.random.split(key, 64))

    def nxt():
        return next(keys)

    def conv_w(ci, co, k):
        bound = (6.0 / (ci * k + co * k)) ** 0.5
        return jax.random.uniform(nxt(), (k, ci, co), jnp.float32,
                                  -bound, bound)

    embed = jax.random.normal(nxt(), (vocab, embed_size), jnp.float32)
    embed = embed.at[0].set(0.0)                       # padding_idx=0

    tcn = []
    c_in = embed_size
    for _ in range(levels):
        c_out = nhid
        blk = {
            "w1": conv_w(c_in, c_out, kernel_size),
            "b1": jax.random.normal(nxt(), (c_out,), jnp.float32) * 0.05,
            "w2": conv_w(c_out, c_out, kernel_size),
            "b2": jax.random.normal(nxt(), (c_out,), jnp.float32) * 0.05,
            "wd": None,
            "bd": None,
        }
        if c_in != c_out:
            blk["wd"] = conv_w(c_in, c_out, 1)
            blk["bd"] = jax.random.normal(nxt(), (c_out,), jnp.float32) * 0.05
        tcn.append(blk)
        c_in = c_out

    lin_bound = (6.0 / (c_in + nproj)) ** 0.5
    out_bound = (6.0 / (nproj + y_labels)) ** 0.5
    return {
        "embed": embed,
        "tcn": tcn,
        "lin_w": jax.random.uniform(nxt(), (1, c_in, nproj), jnp.float32,
                                    -lin_bound, lin_bound),
        "lin_b": jax.random.normal(nxt(), (nproj,), jnp.float32) * 0.05,
        "u_t": jax.random.uniform(nxt(), (nproj, y_labels), jnp.float32,
                                  -out_bound, out_bound),   # U.weight^T
        "wf_t": jax.random.uniform(nxt(), (nproj, y_labels), jnp.float32,
                                   -out_bound, out_bound),  # final.weight^T
        "fb": jax.random.normal(nxt(), (y_labels,), jnp.float32) * 0.05,
    }


if __name__ == "__main__":
    B, T = 2, 16
    VOCAB, EMBED = 48, 32
    NHID, LEVELS, KSIZE = 40, 2, 2
    NPROJ, Y = 32, 16

    root = jax.random.PRNGKey(0)
    k_param, k_data, k_tgt, k_drop = jax.random.split(root, 4)

    params = make_params(k_param, vocab=VOCAB, embed_size=EMBED, nhid=NHID,
                         levels=LEVELS, kernel_size=KSIZE, nproj=NPROJ,
                         y_labels=Y)
    data = jax.random.randint(k_data, (B, T), 0, VOCAB, dtype=jnp.int32)
    target = jax.random.bernoulli(k_tgt, 0.3, (B, Y)).astype(jnp.float32)

    # ---- eval mode (dropout off): must match the pure-JAX reference ----
    logits, loss = dcan_forward(data, target, params, dropout_p=0.0)
    logits, loss = jax.block_until_ready((logits, loss))
    ref_logits, ref_loss = reference_forward(data, target, params)
    assert logits.shape == (B, Y)
    assert jnp.allclose(logits, ref_logits, atol=2e-2, rtol=2e-2), \
        "logits mismatch vs reference"
    assert jnp.allclose(loss, ref_loss, atol=2e-2, rtol=2e-2), \
        "loss mismatch vs reference"

    # ---- label-smoothing branch ----
    logits_s, loss_s = dcan_forward(data, target, params, dropout_p=0.0,
                                    label_smoothing=True, smooth_alpha=0.1)
    logits_s, loss_s = jax.block_until_ready((logits_s, loss_s))
    _, ref_loss_s = reference_forward(data, target, params,
                                      label_smoothing=True, smooth_alpha=0.1)
    assert jnp.allclose(loss_s, ref_loss_s, atol=2e-2, rtol=2e-2), \
        "smoothed loss mismatch vs reference"

    # ---- train mode (dropout on): exercises in-kernel uint32 threshold masks
    logits_d, loss_d = dcan_forward(data, target, params, dropout_p=0.2,
                                    rng_key=k_drop)
    logits_d, loss_d = jax.block_until_ready((logits_d, loss_d))
    assert bool(jnp.all(jnp.isfinite(logits_d))) and bool(jnp.isfinite(loss_d))

    print("KERNEL_OK")
</pallas_src>

<mosaic_0001>
module attributes {stable_mosaic.version = 11 : i64} {
  func.func @_embed_kernel(%arg0: i32, %arg1: memref<128x4xi32, #tpu.memory_space<vmem>>, %arg2: memref<48x32xf32, #tpu.memory_space<vmem>>, %arg3: memref<128x128xf32, #tpu.memory_space<vmem>>) attributes {dimension_semantics = [#tpu.dimension_semantics<parallel>], iteration_bounds = array<i64: 1>, scalar_prefetch = 0 : i64, scratch_operands = 0 : i64, tpu.core_type = #tpu.core_type<tc>, window_params = [{transform_indices = @transform_0, window_bounds = array<i64: 128, 4>}, {pipeline_mode = #tpu.pipeline_mode<synchronous>, transform_indices = @transform_1, window_bounds = array<i64: 48, 32>}, {transform_indices = @transform_2, window_bounds = array<i64: 128, 128>}]} {
    %c0 = arith.constant 0 : index
    %c0_0 = arith.constant 0 : index
    %0 = vector.load %arg1[%c0, %c0_0] : memref<128x4xi32, #tpu.memory_space<vmem>>, vector<128x4xi32>
    %c0_1 = arith.constant 0 : index
    %c0_2 = arith.constant 0 : index
    %1 = vector.load %arg2[%c0_1, %c0_2] : memref<48x32xf32, #tpu.memory_space<vmem>>, vector<48x32xf32>
    %2 = tpu.iota {dimensions = array<i32: 1>} : vector<128x48xi32>
    %3 = vector.extract_strided_slice %0 {offsets = [0, 0], sizes = [128, 1], strides = [1, 1]} : vector<128x4xi32> to vector<128x1xi32>
    %4 = vector.broadcast %3 : vector<128x1xi32> to vector<128x48xi32>
    %5 = arith.cmpi eq, %2, %4 : vector<128x48xi32>
    %6 = arith.extui %5 : vector<128x48xi1> to vector<128x48xi32>
    %7 = arith.sitofp %6 : vector<128x48xi32> to vector<128x48xf32>
    %cst = arith.constant dense<0.000000e+00> : vector<128x32xf32>
    %8 = tpu.matmul %7, %1, %cst {dimension_numbers = #tpu.dot_dimension_numbers<[1], [0], [0], [1], [0, 0, 1, 1], [], []>} : vector<128x48xf32>, vector<48x32xf32>, vector<128x32xf32> -> vector<128x32xf32>
    %9 = vector.extract_strided_slice %0 {offsets = [0, 1], sizes = [128, 1], strides = [1, 1]} : vector<128x4xi32> to vector<128x1xi32>
    %10 = vector.broadcast %9 : vector<128x1xi32> to vector<128x48xi32>
    %11 = arith.cmpi eq, %2, %10 : vector<128x48xi32>
    %12 = arith.extui %11 : vector<128x48xi1> to vector<128x48xi32>
    %13 = arith.sitofp %12 : vector<128x48xi32> to vector<128x48xf32>
    %cst_3 = arith.constant dense<0.000000e+00> : vector<128x32xf32>
    %14 = tpu.matmul %13, %1, %cst_3 {dimension_numbers = #tpu.dot_dimension_numbers<[1], [0], [0], [1], [0, 0, 1, 1], [], []>} : vector<128x48xf32>, vector<48x32xf32>, vector<128x32xf32> -> vector<128x32xf32>
    %15 = vector.extract_strided_slice %0 {offsets = [0, 2], sizes = [128, 1], strides = [1, 1]} : vector<128x4xi32> to vector<128x1xi32>
    %16 = vector.broadcast %15 : vector<128x1xi32> to vector<128x48xi32>
    %17 = arith.cmpi eq, %2, %16 : vector<128x48xi32>
    %18 = arith.extui %17 : vector<128x48xi1> to vector<128x48xi32>
    %19 = arith.sitofp %18 : vector<128x48xi32> to vector<128x48xf32>
    %cst_4 = arith.constant dense<0.000000e+00> : vector<128x32xf32>
    %20 = tpu.matmul %19, %1, %cst_4 {dimension_numbers = #tpu.dot_dimension_numbers<[1], [0], [0], [1], [0, 0, 1, 1], [], []>} : vector<128x48xf32>, vector<48x32xf32>, vector<128x32xf32> -> vector<128x32xf32>
    %21 = vector.extract_strided_slice %0 {offsets = [0, 3], sizes = [128, 1], strides = [1, 1]} : vector<128x4xi32> to vector<128x1xi32>
    %22 = vector.broadcast %21 : vector<128x1xi32> to vector<128x48xi32>
    %23 = arith.cmpi eq, %2, %22 : vector<128x48xi32>
    %24 = arith.extui %23 : vector<128x48xi1> to vector<128x48xi32>
    %25 = arith.sitofp %24 : vector<128x48xi32> to vector<128x48xf32>
    %cst_5 = arith.constant dense<0.000000e+00> : vector<128x32xf32>
    %26 = tpu.matmul %25, %1, %cst_5 {dimension_numbers = #tpu.dot_dimension_numbers<[1], [0], [0], [1], [0, 0, 1, 1], [], []>} : vector<128x48xf32>, vector<48x32xf32>, vector<128x32xf32> -> vector<128x32xf32>
    %27 = tpu.concatenate %8, %14, %20, %26 in 1 : vector<128x32xf32>, vector<128x32xf32>, vector<128x32xf32>, vector<128x32xf32> -> vector<128x128xf32>
    %c0_6 = arith.constant 0 : index
    %c0_7 = arith.constant 0 : index
    %28 = vector.load %arg3[%c0_6, %c0_7] : memref<128x128xf32, #tpu.memory_space<vmem>>, vector<128x128xf32>
    tpu.vector_store %arg3[%c0_6, %c0_7], %27 {strides = array<i32>} : memref<128x128xf32, #tpu.memory_space<vmem>>, vector<128x128xf32>,
    return
  }
  func.func @transform_0(%arg0: i32) -> (i32, i32) {
    %c0_i32 = arith.constant 0 : i32
    %c0_i32_0 = arith.constant 0 : i32
    return %arg0, %c0_i32 : i32, i32
  }
  func.func @transform_1(%arg0: i32) -> (i32, i32) {
    %c0_i32 = arith.constant 0 : i32
    %c0_i32_0 = arith.constant 0 : i32
    %c0_i32_1 = arith.constant 0 : i32
    return %c0_i32, %c0_i32_0 : i32, i32
  }
  func.func @transform_2(%arg0: i32) -> (i32, i32) {
    %c0_i32 = arith.constant 0 : i32
    %c0_i32_0 = arith.constant 0 : i32
    return %arg0, %c0_i32 : i32, i32
  }
}

</mosaic_0001>

<llo_original>
// kernel: tpu_custom_call.1
$region0: #{tpu_custom_call.1}
  #allocation0 [shape = 'u32[]', space=smem, size = 0x4, offset = 0x4, fixed_abs, tag = 'smem constant byte address 0x4 - core index']
  #allocation1 [shape = 'u32[144,128]{1,0:T(1,128)}', space=vmem, size = 0x12000, scoped, tag = 'internal scratch']
  %s0 = inlined_call_operand.vmem [shape: s32[128,4], index: 0, kind: input, shape index: {}]
  %s1 = inlined_call_operand.vmem [shape: f32[48,32], index: 1, kind: input, shape index: {}]
  %s2 = inlined_call_operand.hbm [shape: f32[128,128], index: 2, kind: output, shape index: {}]
  %s3 = sld [smem:[#allocation0]]
  $region18: #{tpu_custom_call.1} parent=0
    _
  %s5 = ssub.s32 1, %s3
  %s6 = scalar_select 0, %s5, %s3
  $region1: #{tpu_custom_call.1} parent=0
    #allocation2 [shape = 'u8[65536]{0}', space=vmem, size = 0x10000, scoped, tag = 'output window, operand 0, single buffered']
    #allocation3 [shape = 's32[1]{0}', space=sflag, size = 0x4, scoped, tag = 'scoped memory for tpu_custom_call.1']
    %7 = vsyncpa [#allocation3], 0
    // Predicated region
    $region2: #{tpu_custom_call.1} parent=1 // pred_check
      _
    $region3: #{tpu_custom_call.1} parent=1 // pred_check_branch
      %9 = sbr.rel (0) target = $region5
    $region4: #{tpu_custom_call.1} parent=1 // pred_region
      _
    $region5: #{tpu_custom_call.1} parent=1 // pred_fallthru
      _
    // Predicated region
    $region6: #{tpu_custom_call.1} parent=1 // pred_check
      _
    $region7: #{tpu_custom_call.1} parent=1 // pred_check_branch
      %11 = sbr.rel (0) target = $region9
    $region8: #{tpu_custom_call.1} parent=1 // pred_region
      _
    $region9: #{tpu_custom_call.1} parent=1 // pred_fallthru
      _
    %v12 = vld [vmem:[%s0] sm:$0xff]
    %v13 = vld [vmem:[%s0 + $0x8] sm:$0xff]
    %v14 = vld [vmem:[%s0 + $0x10] sm:$0xff]
    %v15 = vld [vmem:[%s0 + $0x18] sm:$0xff]
    %v16 = vld [vmem:[%s0 + $0x20] sm:$0xff]
    %v17 = vld [vmem:[%s0 + $0x28] sm:$0xff]
    %v18 = vld [vmem:[%s0 + $0x30] sm:$0xff]
    %v19 = vld [vmem:[%s0 + $0x38] sm:$0xff]
    %v20 = vld [vmem:[%s0 + $0x40] sm:$0xff]
    %v21 = vld [vmem:[%s0 + $0x48] sm:$0xff]
    %v22 = vld [vmem:[%s0 + $0x50] sm:$0xff]
    %v23 = vld [vmem:[%s0 + $0x58] sm:$0xff]
    %v24 = vld [vmem:[%s0 + $0x60] sm:$0xff]
    %v25 = vld [vmem:[%s0 + $0x68] sm:$0xff]
    %v26 = vld [vmem:[%s0 + $0x70] sm:$0xff]
    %v27 = vld [vmem:[%s0 + $0x78] sm:$0xff]
    %v28 = vld [vmem:[%s1] sm:$0xff]
    %v29 = vld [vmem:[%s1 + $0x8] sm:$0xff]
    %v30 = vld [vmem:[%s1 + $0x10] sm:$0xff]
    %v31 = vld [vmem:[%s1 + $0x18] sm:$0xff]
    %v32 = vld [vmem:[%s1 + $0x20] sm:$0xff]
    %v33 = vld [vmem:[%s1 + $0x28] sm:$0xff]
    %v34 = vlaneseq
    %v35 = vand.u32 %v34, 127
    %36 = vset.pattern.permute.xlu0 0
    %37 = vperm.xlu0 %36, %v12
    %v38 = vpop.permute.xlu0 %37
    %39 = vset.pattern.permute.xlu0 0
    %40 = vperm.xlu0 %39, %v13
    %v41 = vpop.permute.xlu0 %40
    %42 = vset.pattern.permute.xlu0 0
    %43 = vperm.xlu0 %42, %v14
    %v44 = vpop.permute.xlu0 %43
    %45 = vset.pattern.permute.xlu0 0
    %46 = vperm.xlu0 %45, %v15
    %v47 = vpop.permute.xlu0 %46
    %48 = vset.pattern.permute.xlu0 0
    %49 = vperm.xlu0 %48, %v16
    %v50 = vpop.permute.xlu0 %49
    %51 = vset.pattern.permute.xlu0 0
    %52 = vperm.xlu0 %51, %v17
    %v53 = vpop.permute.xlu0 %52
    %54 = vset.pattern.permute.xlu0 0
    %55 = vperm.xlu0 %54, %v18
    %v56 = vpop.permute.xlu0 %55
    %57 = vset.pattern.permute.xlu0 0
    %58 = vperm.xlu0 %57, %v19
    %v59 = vpop.permute.xlu0 %58
    %60 = vset.pattern.permute.xlu0 0
    %61 = vperm.xlu0 %60, %v20
    %v62 = vpop.permute.xlu0 %61
    %63 = vset.pattern.permute.xlu0 0
    %64 = vperm.xlu0 %63, %v21
    %v65 = vpop.permute.xlu0 %64
    %66 = vset.pattern.permute.xlu0 0
    %67 = vperm.xlu0 %66, %v22
    %v68 = vpop.permute.xlu0 %67
    %69 = vset.pattern.permute.xlu0 0
    %70 = vperm.xlu0 %69, %v23
    %v71 = vpop.permute.xlu0 %70
    %72 = vset.pattern.permute.xlu0 0
    %73 = vperm.xlu0 %72, %v24
    %v74 = vpop.permute.xlu0 %73
    %75 = vset.pattern.permute.xlu0 0
    %76 = vperm.xlu0 %75, %v25
    %v77 = vpop.permute.xlu0 %76
    %78 = vset.pattern.permute.xlu0 0
    %79 = vperm.xlu0 %78, %v26
    %v80 = vpop.permute.xlu0 %79
    %81 = vset.pattern.permute.xlu0 0
    %82 = vperm.xlu0 %81, %v27
    %v83 = vpop.permute.xlu0 %82
    %vm84 = vcmp.eq.s32.totalorder %v35, %v38
    %vm85 = vcmp.eq.s32.totalorder %v35, %v41
    %vm86 = vcmp.eq.s32.totalorder %v35, %v44
    %vm87 = vcmp.eq.s32.totalorder %v35, %v47
    %vm88 = vcmp.eq.s32.totalorder %v35, %v50
    %vm89 = vcmp.eq.s32.totalorder %v35, %v53
    %vm90 = vcmp.eq.s32.totalorder %v35, %v56
    %vm91 = vcmp.eq.s32.totalorder %v35, %v59
    %vm92 = vcmp.eq.s32.totalorder %v35, %v62
    %vm93 = vcmp.eq.s32.totalorder %v35, %v65
    %vm94 = vcmp.eq.s32.totalorder %v35, %v68
    %vm95 = vcmp.eq.s32.totalorder %v35, %v71
    %vm96 = vcmp.eq.s32.totalorder %v35, %v74
    %vm97 = vcmp.eq.s32.totalorder %v35, %v77
    %vm98 = vcmp.eq.s32.totalorder %v35, %v80
    %vm99 = vcmp.eq.s32.totalorder %v35, %v83
    %v100 = vsel %vm84, 1, 0
    %v101 = vsel %vm85, 1, 0
    %v102 = vsel %vm86, 1, 0
    %v103 = vsel %vm87, 1, 0
    %v104 = vsel %vm88, 1, 0
    %v105 = vsel %vm89, 1, 0
    %v106 = vsel %vm90, 1, 0
    %v107 = vsel %vm91, 1, 0
    %v108 = vsel %vm92, 1, 0
    %v109 = vsel %vm93, 1, 0
    %v110 = vsel %vm94, 1, 0
    %v111 = vsel %vm95, 1, 0
    %v112 = vsel %vm96, 1, 0
    %v113 = vsel %vm97, 1, 0
    %v114 = vsel %vm98, 1, 0
    %v115 = vsel %vm99, 1, 0
    %v116 = vcvt.s32.f32 %v100
    %v117 = vcvt.s32.f32 %v101
    %v118 = vcvt.s32.f32 %v102
    %v119 = vcvt.s32.f32 %v103
    %v120 = vcvt.s32.f32 %v104
    %v121 = vcvt.s32.f32 %v105
    %v122 = vcvt.s32.f32 %v106
    %v123 = vcvt.s32.f32 %v107
    %v124 = vcvt.s32.f32 %v108
    %v125 = vcvt.s32.f32 %v109
    %v126 = vcvt.s32.f32 %v110
    %v127 = vcvt.s32.f32 %v111
    %v128 = vcvt.s32.f32 %v112
    %v129 = vcvt.s32.f32 %v113
    %v130 = vcvt.s32.f32 %v114
    %v131 = vcvt.s32.f32 %v115
    %vm132 = vcmask 392192
    %v134 = vsel %vm132, %v116, 0
    %v137 = vsel %vm132, %v117, 0
    %v140 = vsel %vm132, %v118, 0
    %v143 = vsel %vm132, %v119, 0
    %v146 = vsel %vm132, %v120, 0
    %v149 = vsel %vm132, %v121, 0
    %v152 = vsel %vm132, %v122, 0
    %v155 = vsel %vm132, %v123, 0
    %v158 = vsel %vm132, %v124, 0
    %v161 = vsel %vm132, %v125, 0
    %v164 = vsel %vm132, %v126, 0
    %v167 = vsel %vm132, %v127, 0
    %v170 = vsel %vm132, %v128, 0
    %v173 = vsel %vm132, %v129, 0
    %v176 = vsel %vm132, %v130, 0
    %v179 = vsel %vm132, %v131, 0
    %181 = vmatprep.subr.mxu0 0.0
    %182 = vmatpush1.msra.mxu0 %v28
    %183 = vmatprep.subr.mxu0 0.0
    %184 = vmatpush1.msra.mxu0 %v29
    %185 = vmatprep.subr.mxu0 0.0
    %186 = vmatpush1.msra.mxu0 %v30
    %187 = vmatprep.subr.mxu0 0.0
    %188 = vmatpush1.msra.mxu0 %v31
    %189 = vmatprep.subr.mxu0 0.0
    %190 = vmatpush1.msra.mxu0 %v32
    %191 = vmatprep.subr.mxu0 0.0
    %192 = vmatpush1.msra.mxu0 %v33
    %193 = vmatprep.subr.mxu0 0.0
    %194 = vmatpush1.msra.mxu0 0.0
    %195 = vmatprep.subr.mxu0 0.0
    %196 = vmatpush1.msra.mxu0 0.0
    %197 = vmatprep.subr.mxu0 0.0
    %198 = vmatpush1.msra.mxu0 0.0
    %199 = vmatprep.subr.mxu0 0.0
    %200 = vmatpush1.msra.mxu0 0.0
    %201 = vmatprep.subr.mxu0 0.0
    %202 = vmatpush1.msra.mxu0 0.0
    %203 = vmatprep.subr.mxu0 0.0
    %204 = vmatpush1.msra.mxu0 0.0
    %205 = vmatprep.subr.mxu0 0.0
    %206 = vmatpush1.msra.mxu0 0.0
    %207 = vmatprep.subr.mxu0 0.0
    %208 = vmatpush1.msra.mxu0 0.0
    %209 = vmatprep.subr.mxu0 0.0
    %210 = vmatpush1.msra.mxu0 0.0
    %211 = vmatprep.subr.mxu0 0.0
    %212 = vmatpush1.msra.mxu0 0.0
    %213 = vmatprep.subr.mxu0 0.0
    %214 = vmatpush1.msra.mxu0 0.0
    %215 = vmatprep.subr.mxu0 0.0
    %216 = vmatpush1.msra.mxu0 0.0
    %217 = vmatprep.subr.mxu0 0.0
    %218 = vmatpush1.msra.mxu0 0.0
    %219 = vmatprep.subr.mxu0 0.0
    %220 = vmatpush1.msra.mxu0 0.0
    %221 = vmatprep.subr.mxu0 0.0
    %222 = vmatpush1.msra.mxu0 0.0
    %223 = vmatprep.subr.mxu0 0.0
    %224 = vmatpush1.msra.mxu0 0.0
    %225 = vmatprep.subr.mxu0 0.0
    %226 = vmatpush1.msra.mxu0 0.0
    %227 = vmatprep.subr.mxu0 0.0
    %228 = vmatpush1.msra.mxu0 0.0
    %229 = vmatprep.subr.mxu0 0.0
    %230 = vmatpush1.msra.mxu0 0.0
    %231 = vmatprep.subr.mxu0 0.0
    %232 = vmatpush1.msra.mxu0 0.0
    %233 = vmatprep.subr.mxu0 0.0
    %234 = vmatpush1.msra.mxu0 0.0
    %235 = vmatprep.subr.mxu0 0.0
    %236 = vmatpush1.msra.mxu0 0.0
    %237 = vmatprep.subr.mxu0 0.0
    %238 = vmatpush1.msra.mxu0 0.0
    %239 = vmatprep.subr.mxu0 0.0
    %240 = vmatpush1.msra.mxu0 0.0
    %241 = vmatprep.subr.mxu0 0.0
    %242 = vmatpush1.msra.mxu0 0.0
    %243 = vmatprep.subr.mxu0 0.0
    %244 = vmatpush1.msra.mxu0 0.0
    %245 = vmatprep.mubr.f32.mxu0 0.0
    %246 = vmatmul.mubr.f32.gmra.mrb[0].mxu0 %v134
    %v247 = vpop.f32.mrb[0].mxu0
    %v248 = vadd.f32 0.0, %v247
    %v249 = vpop.f32.mrb[0].mxu0
    %250 = vmatprep.mubr.f32.mxu0 0.0
    %251 = vmatmul.mubr.f32.gmra.mrb[0].mxu0 %v137
    %v252 = vpop.f32.mrb[0].mxu0
    %v253 = vadd.f32 0.0, %v252
    %v254 = vpop.f32.mrb[0].mxu0
    %255 = vmatprep.mubr.f32.mxu0 0.0
    %256 = vmatmul.mubr.f32.gmra.mrb[0].mxu0 %v140
    %v257 = vpop.f32.mrb[0].mxu0
    %v258 = vadd.f32 0.0, %v257
    %v259 = vpop.f32.mrb[0].mxu0
    %260 = vmatprep.mubr.f32.mxu0 0.0
    %261 = vmatmul.mubr.f32.gmra.mrb[0].mxu0 %v143
    %v262 = vpop.f32.mrb[0].mxu0
    %v263 = vadd.f32 0.0, %v262
    %v264 = vpop.f32.mrb[0].mxu0
    %265 = vmatprep.mubr.f32.mxu0 0.0
    %266 = vmatmul.mubr.f32.gmra.mrb[0].mxu0 %v146
    %v267 = vpop.f32.mrb[0].mxu0
    %v268 = vadd.f32 0.0, %v267
    %v269 = vpop.f32.mrb[0].mxu0
    %270 = vmatprep.mubr.f32.mxu0 0.0
    %271 = vmatmul.mubr.f32.gmra.mrb[0].mxu0 %v149
    %v272 = vpop.f32.mrb[0].mxu0
    %v273 = vadd.f32 0.0, %v272
    %v274 = vpop.f32.mrb[0].mxu0
    %275 = vmatprep.mubr.f32.mxu0 0.0
    %276 = vmatmul.mubr.f32.gmra.mrb[0].mxu0 %v152
    %v277 = vpop.f32.mrb[0].mxu0
    %v278 = vadd.f32 0.0, %v277
    %v279 = vpop.f32.mrb[0].mxu0
    %280 = vmatprep.mubr.f32.mxu0 0.0
    %281 = vmatmul.mubr.f32.gmra.mrb[0].mxu0 %v155
    %v282 = vpop.f32.mrb[0].mxu0
    %v283 = vadd.f32 0.0, %v282
    %v284 = vpop.f32.mrb[0].mxu0
    %285 = vmatprep.mubr.f32.mxu0 0.0
    %286 = vmatmul.mubr.f32.gmra.mrb[0].mxu0 %v158
    %v287 = vpop.f32.mrb[0].mxu0
    %v288 = vadd.f32 0.0, %v287
    %v289 = vpop.f32.mrb[0].mxu0
    %290 = vmatprep.mubr.f32.mxu0 0.0
    %291 = vmatmul.mubr.f32.gmra.mrb[0].mxu0 %v161
    %v292 = vpop.f32.mrb[0].mxu0
    %v293 = vadd.f32 0.0, %v292
    %v294 = vpop.f32.mrb[0].mxu0
    %295 = vmatprep.mubr.f32.mxu0 0.0
    %296 = vmatmul.mubr.f32.gmra.mrb[0].mxu0 %v164
    %v297 = vpop.f32.mrb[0].mxu0
    %v298 = vadd.f32 0.0, %v297
    %v299 = vpop.f32.mrb[0].mxu0
    %300 = vmatprep.mubr.f32.mxu0 0.0
    %301 = vmatmul.mubr.f32.gmra.mrb[0].mxu0 %v167
    %v302 = vpop.f32.mrb[0].mxu0
    %v303 = vadd.f32 0.0, %v302
    %v304 = vpop.f32.mrb[0].mxu0
    %305 = vmatprep.mubr.f32.mxu0 0.0
    %306 = vmatmul.mubr.f32.gmra.mrb[0].mxu0 %v170
    %v307 = vpop.f32.mrb[0].mxu0
    %v308 = vadd.f32 0.0, %v307
    %v309 = vpop.f32.mrb[0].mxu0
    %310 = vmatprep.mubr.f32.mxu0 0.0
    %311 = vmatmul.mubr.f32.gmra.mrb[0].mxu0 %v173
    %v312 = vpop.f32.mrb[0].mxu0
    %v313 = vadd.f32 0.0, %v312
    %v314 = vpop.f32.mrb[0].mxu0
    %315 = vmatprep.mubr.f32.mxu0 0.0
    %316 = vmatmul.mubr.f32.gmra.mrb[0].mxu0 %v176
    %v317 = vpop.f32.mrb[0].mxu0
    %v318 = vadd.f32 0.0, %v317
    %v319 = vpop.f32.mrb[0].mxu0
    %320 = vmatprep.mubr.f32.mxu0 0.0
    %321 = vmatmul.mubr.f32.gmra.mrb[0].mxu0 %v179
    %v322 = vpop.f32.mrb[0].mxu0
    %v323 = vadd.f32 0.0, %v322
    %v324 = vpop.f32.mrb[0].mxu0
    %325 = vdwg.mxu0
    %326 = vset.pattern.permute.xlu0 1
    %327 = vperm.xlu0 %326, %v12
    %v328 = vpop.permute.xlu0 %327
    %329 = vset.pattern.permute.xlu0 1
    %330 = vperm.xlu0 %329, %v13
    %v331 = vpop.permute.xlu0 %330
    %332 = vset.pattern.permute.xlu0 1
    %333 = vperm.xlu0 %332, %v14
    %v334 = vpop.permute.xlu0 %333
    %335 = vset.pattern.permute.xlu0 1
    %336 = vperm.xlu0 %335, %v15
    %v337 = vpop.permute.xlu0 %336
    %338 = vset.pattern.permute.xlu0 1
    %339 = vperm.xlu0 %338, %v16
    %v340 = vpop.permute.xlu0 %339
    %341 = vset.pattern.permute.xlu0 1
    %342 = vperm.xlu0 %341, %v17
    %v343 = vpop.permute.xlu0 %342
    %344 = vset.pattern.permute.xlu0 1
    %345 = vperm.xlu0 %344, %v18
    %v346 = vpop.permute.xlu0 %345
    %347 = vset.pattern.permute.xlu0 1
    %348 = vperm.xlu0 %347, %v19
    %v349 = vpop.permute.xlu0 %348
    %350 = vset.pattern.permute.xlu0 1
    %351 = vperm.xlu0 %350, %v20
    %v352 = vpop.permute.xlu0 %351
    %353 = vset.pattern.permute.xlu0 1
    %354 = vperm.xlu0 %353, %v21
    %v355 = vpop.permute.xlu0 %354
    %356 = vset.pattern.permute.xlu0 1
    %357 = vperm.xlu0 %356, %v22
    %v358 = vpop.permute.xlu0 %357
    %359 = vset.pattern.permute.xlu0 1
    %360 = vperm.xlu0 %359, %v23
    %v361 = vpop.permute.xlu0 %360
    %362 = vset.pattern.permute.xlu0 1
    %363 = vperm.xlu0 %362, %v24
    %v364 = vpop.permute.xlu0 %363
    %365 = vset.pattern.permute.xlu0 1
    %366 = vperm.xlu0 %365, %v25
    %v367 = vpop.permute.xlu0 %366
    %368 = vset.pattern.permute.xlu0 1
    %369 = vperm.xlu0 %368, %v26
    %v370 = vpop.permute.xlu0 %369
    %371 = vset.pattern.permute.xlu0 1
    %372 = vperm.xlu0 %371, %v27
    %v373 = vpop.permute.xlu0 %372
    %vm374 = vcmp.eq.s32.totalorder %v35, %v328
    %vm375 = vcmp.eq.s32.totalorder %v35, %v331
    %vm376 = vcmp.eq.s32.totalorder %v35, %v334
    %vm377 = vcmp.eq.s32.totalorder %v35, %v337
    %vm378 = vcmp.eq.s32.totalorder %v35, %v340
    %vm379 = vcmp.eq.s32.totalorder %v35, %v343
    %vm380 = vcmp.eq.s32.totalorder %v35, %v346
    %vm381 = vcmp.eq.s32.totalorder %v35, %v349
    %vm382 = vcmp.eq.s32.totalorder %v35, %v352
    %vm383 = vcmp.eq.s32.totalorder %v35, %v355
    %vm384 = vcmp.eq.s32.totalorder %v35, %v358
    %vm385 = vcmp.eq.s32.totalorder %v35, %v361
    %vm386 = vcmp.eq.s32.totalorder %v35, %v364
    %vm387 = vcmp.eq.s32.totalorder %v35, %v367
    %vm388 = vcmp.eq.s32.totalorder %v35, %v370
    %vm389 = vcmp.eq.s32.totalorder %v35, %v373
    %v390 = vsel %vm374, 1, 0
    %v391 = vsel %vm375, 1, 0
    %v392 = vsel %vm376, 1, 0
    %v393 = vsel %vm377, 1, 0
    %v394 = vsel %vm378, 1, 0
    %v395 = vsel %vm379, 1, 0
    %v396 = vsel %vm380, 1, 0
    %v397 = vsel %vm381, 1, 0
    %v398 = vsel %vm382, 1, 0
    %v399 = vsel %vm383, 1, 0
    %v400 = vsel %vm384, 1, 0
    %v401 = vsel %vm385, 1, 0
    %v402 = vsel %vm386, 1, 0
    %v403 = vsel %vm387, 1, 0
    %v404 = vsel %vm388, 1, 0
    %v405 = vsel %vm389, 1, 0
    %v406 = vcvt.s32.f32 %v390
    %v407 = vcvt.s32.f32 %v391
    %v408 = vcvt.s32.f32 %v392
    %v409 = vcvt.s32.f32 %v393
    %v410 = vcvt.s32.f32 %v394
    %v411 = vcvt.s32.f32 %v395
    %v412 = vcvt.s32.f32 %v396
    %v413 = vcvt.s32.f32 %v397
    %v414 = vcvt.s32.f32 %v398
    %v415 = vcvt.s32.f32 %v399
    %v416 = vcvt.s32.f32 %v400
    %v417 = vcvt.s32.f32 %v401
    %v418 = vcvt.s32.f32 %v402
    %v419 = vcvt.s32.f32 %v403
    %v420 = vcvt.s32.f32 %v404
    %v421 = vcvt.s32.f32 %v405
    %v423 = vsel %vm132, %v406, 0
    %v426 = vsel %vm132, %v407, 0
    %v429 = vsel %vm132, %v408, 0
    %v432 = vsel %vm132, %v409, 0
    %v435 = vsel %vm132, %v410, 0
    %v438 = vsel %vm132, %v411, 0
    %v441 = vsel %vm132, %v412, 0
    %v444 = vsel %vm132, %v413, 0
    %v447 = vsel %vm132, %v414, 0
    %v450 = vsel %vm132, %v415, 0
    %v453 = vsel %vm132, %v416, 0
    %v456 = vsel %vm132, %v417, 0
    %v459 = vsel %vm132, %v418, 0
    %v462 = vsel %vm132, %v419, 0
    %v465 = vsel %vm132, %v420, 0
    %v468 = vsel %vm132, %v421, 0
    %470 = vmatprep.subr.mxu0 0.0
    %471 = vmatpush1.msra.mxu0 %v28
    %472 = vmatprep.subr.mxu0 0.0
    %473 = vmatpush1.msra.mxu0 %v29
    %474 = vmatprep.subr.mxu0 0.0
    %475 = vmatpush1.msra.mxu0 %v30
    %476 = vmatprep.subr.mxu0 0.0
    %477 = vmatpush1.msra.mxu0 %v31
    %478 = vmatprep.subr.mxu0 0.0
    %479 = vmatpush1.msra.mxu0 %v32
    %480 = vmatprep.subr.mxu0 0.0
    %481 = vmatpush1.msra.mxu0 %v33
    %482 = vmatprep.subr.mxu0 0.0
    %483 = vmatpush1.msra.mxu0 0.0
    %484 = vmatprep.subr.mxu0 0.0
    %485 = vmatpush1.msra.mxu0 0.0
    %486 = vmatprep.subr.mxu0 0.0
    %487 = vmatpush1.msra.mxu0 0.0
    %488 = vmatprep.subr.mxu0 0.0
    %489 = vmatpush1.msra.mxu0 0.0
    %490 = vmatprep.subr.mxu0 0.0
    %491 = vmatpush1.msra.mxu0 0.0
    %492 = vmatprep.subr.mxu0 0.0
    %493 = vmatpush1.msra.mxu0 0.0
    %494 = vmatprep.subr.mxu0 0.0
    %495 = vmatpush1.msra.mxu0 0.0
    %496 = vmatprep.subr.mxu0 0.0
    %497 = vmatpush1.msra.mxu0 0.0
    %498 = vmatprep.subr.mxu0 0.0
    %499 = vmatpush1.msra.mxu0 0.0
    %500 = vmatprep.subr.mxu0 0.0
    %501 = vmatpush1.msra.mxu0 0.0
    %502 = vmatprep.subr.mxu0 0.0
    %503 = vmatpush1.msra.mxu0 0.0
    %504 = vmatprep.subr.mxu0 0.0
    %505 = vmatpush1.msra.mxu0 0.0
    %506 = vmatprep.subr.mxu0 0.0
    %507 = vmatpush1.msra.mxu0 0.0
    %508 = vmatprep.subr.mxu0 0.0
    %509 = vmatpush1.msra.mxu0 0.0
    %510 = vmatprep.subr.mxu0 0.0
    %511 = vmatpush1.msra.mxu0 0.0
    %512 = vmatprep.subr.mxu0 0.0
    %513 = vmatpush1.msra.mxu0 0.0
    %514 = vmatprep.subr.mxu0 0.0
    %515 = vmatpush1.msra.mxu0 0.0
    %516 = vmatprep.subr.mxu0 0.0
    %517 = vmatpush1.msra.mxu0 0.0
    %518 = vmatprep.subr.mxu0 0.0
    %519 = vmatpush1.msra.mxu0 0.0
    %520 = vmatprep.subr.mxu0 0.0
    %521 = vmatpush1.msra.mxu0 0.0
    %522 = vmatprep.subr.mxu0 0.0
    %523 = vmatpush1.msra.mxu0 0.0
    %524 = vmatprep.subr.mxu0 0.0
    %525 = vmatpush1.msra.mxu0 0.0
    %526 = vmatprep.subr.mxu0 0.0
    %527 = vmatpush1.msra.mxu0 0.0
    %528 = vmatprep.subr.mxu0 0.0
    %529 = vmatpush1.msra.mxu0 0.0
    %530 = vmatprep.subr.mxu0 0.0
    %531 = vmatpush1.msra.mxu0 0.0
    %532 = vmatprep.subr.mxu0 0.0
    %533 = vmatpush1.msra.mxu0 0.0
    %534 = vmatprep.mubr.f32.mxu0 0.0
    %535 = vmatmul.mubr.f32.gmra.mrb[0].mxu0 %v423
    %v536 = vpop.f32.mrb[0].mxu0
    %v537 = vadd.f32 0.0, %v536
    %v538 = vpop.f32.mrb[0].mxu0
    %539 = vmatprep.mubr.f32.mxu0 0.0
    %540 = vmatmul.mubr.f32.gmra.mrb[0].mxu0 %v426
    %v541 = vpop.f32.mrb[0].mxu0
    %v542 = vadd.f32 0.0, %v541
    %v543 = vpop.f32.mrb[0].mxu0
    %544 = vmatprep.mubr.f32.mxu0 0.0
    %545 = vmatmul.mubr.f32.gmra.mrb[0].mxu0 %v429
    %v546 = vpop.f32.mrb[0].mxu0
    %v547 = vadd.f32 0.0, %v546
    %v548 = vpop.f32.mrb[0].mxu0
    %549 = vmatprep.mubr.f32.mxu0 0.0
    %550 = vmatmul.mubr.f32.gmra.mrb[0].mxu0 %v432
    %v551 = vpop.f32.mrb[0].mxu0
    %v552 = vadd.f32 0.0, %v551
    %v553 = vpop.f32.mrb[0].mxu0
    %554 = vmatprep.mubr.f32.mxu0 0.0
    %555 = vmatmul.mubr.f32.gmra.mrb[0].mxu0 %v435
    %v556 = vpop.f32.mrb[0].mxu0
    %v557 = vadd.f32 0.0, %v556
    %v558 = vpop.f32.mrb[0].mxu0
    %559 = vmatprep.mubr.f32.mxu0 0.0
    %560 = vmatmul.mubr.f32.gmra.mrb[0].mxu0 %v438
    %v561 = vpop.f32.mrb[0].mxu0
    %v562 = vadd.f32 0.0, %v561
    %v563 = vpop.f32.mrb[0].mxu0
    %564 = vmatprep.mubr.f32.mxu0 0.0
    %565 = vmatmul.mubr.f32.gmra.mrb[0].mxu0 %v441
    %v566 = vpop.f32.mrb[0].mxu0
    %v567 = vadd.f32 0.0, %v566
    %v568 = vpop.f32.mrb[0].mxu0
    %569 = vmatprep.mubr.f32.mxu0 0.0
    %570 = vmatmul.mubr.f32.gmra.mrb[0].mxu0 %v444
    %v571 = vpop.f32.mrb[0].mxu0
    %v572 = vadd.f32 0.0, %v571
    %v573 = vpop.f32.mrb[0].mxu0
    %574 = vmatprep.mubr.f32.mxu0 0.0
    %575 = vmatmul.mubr.f32.gmra.mrb[0].mxu0 %v447
    %v576 = vpop.f32.mrb[0].mxu0
    %v577 = vadd.f32 0.0, %v576
    %v578 = vpop.f32.mrb[0].mxu0
    %579 = vmatprep.mubr.f32.mxu0 0.0
    %580 = vmatmul.mubr.f32.gmra.mrb[0].mxu0 %v450
    %v581 = vpop.f32.mrb[0].mxu0
    %v582 = vadd.f32 0.0, %v581
    %v583 = vpop.f32.mrb[0].mxu0
    %584 = vmatprep.mubr.f32.mxu0 0.0
    %585 = vmatmul.mubr.f32.gmra.mrb[0].mxu0 %v453
    %v586 = vpop.f32.mrb[0].mxu0
    %v587 = vadd.f32 0.0, %v586
    %v588 = vpop.f32.mrb[0].mxu0
    %589 = vmatprep.mubr.f32.mxu0 0.0
    %590 = vmatmul.mubr.f32.gmra.mrb[0].mxu0 %v456
    %v591 = vpop.f32.mrb[0].mxu0
    %v592 = vadd.f32 0.0, %v591
    %v593 = vpop.f32.mrb[0].mxu0
    %594 = vmatprep.mubr.f32.mxu0 0.0
    %595 = vmatmul.mubr.f32.gmra.mrb[0].mxu0 %v459
    %v596 = vpop.f32.mrb[0].mxu0
    %v597 = vadd.f32 0.0, %v596
    %v598 = vpop.f32.mrb[0].mxu0
    %599 = vmatprep.mubr.f32.mxu0 0.0
    %600 = vmatmul.mubr.f32.gmra.mrb[0].mxu0 %v462
    %v601 = vpop.f32.mrb[0].mxu0
    %v602 = vadd.f32 0.0, %v601
    %v603 = vpop.f32.mrb[0].mxu0
    %604 = vmatprep.mubr.f32.mxu0 0.0
    %605 = vmatmul.mubr.f32.gmra.mrb[0].mxu0 %v465
    %v606 = vpop.f32.mrb[0].mxu0
    %v607 = vadd.f32 0.0, %v606
    %v608 = vpop.f32.mrb[0].mxu0
    %609 = vmatprep.mubr.f32.mxu0 0.0
    %610 = vmatmul.mubr.f32.gmra.mrb[0].mxu0 %v468
    %v611 = vpop.f32.mrb[0].mxu0
    %v612 = vadd.f32 0.0, %v611
    %v613 = vpop.f32.mrb[0].mxu0
    %614 = vdwg.mxu0
    %615 = vset.pattern.permute.xlu0 2
    %616 = vperm.xlu0 %615, %v12
    %v617 = vpop.permute.xlu0 %616
    %618 = vset.pattern.permute.xlu0 2
    %619 = vperm.xlu0 %618, %v13
    %v620 = vpop.permute.xlu0 %619
    %621 = vset.pattern.permute.xlu0 2
    %622 = vperm.xlu0 %621, %v14
    %v623 = vpop.permute.xlu0 %622
    %624 = vset.pattern.permute.xlu0 2
    %625 = vperm.xlu0 %624, %v15
    %v626 = vpop.permute.xlu0 %625
    %627 = vset.pattern.permute.xlu0 2
    %628 = vperm.xlu0 %627, %v16
    %v629 = vpop.permute.xlu0 %628
    %630 = vset.pattern.permute.xlu0 2
    %631 = vperm.xlu0 %630, %v17
    %v632 = vpop.permute.xlu0 %631
    %633 = vset.pattern.permute.xlu0 2
    %634 = vperm.xlu0 %633, %v18
    %v635 = vpop.permute.xlu0 %634
    %636 = vset.pattern.permute.xlu0 2
    %637 = vperm.xlu0 %636, %v19
    %v638 = vpop.permute.xlu0 %637
    %639 = vset.pattern.permute.xlu0 2
    %640 = vperm.xlu0 %639, %v20
    %v641 = vpop.permute.xlu0 %640
    %642 = vset.pattern.permute.xlu0 2
    %643 = vperm.xlu0 %642, %v21
    %v644 = vpop.permute.xlu0 %643
    %645 = vset.pattern.permute.xlu0 2
    %646 = vperm.xlu0 %645, %v22
    %v647 = vpop.permute.xlu0 %646
    %648 = vset.pattern.permute.xlu0 2
    %649 = vperm.xlu0 %648, %v23
    %v650 = vpop.permute.xlu0 %649
    %651 = vset.pattern.permute.xlu0 2
    %652 = vperm.xlu0 %651, %v24
    %v653 = vpop.permute.xlu0 %652
    %654 = vset.pattern.permute.xlu0 2
    %655 = vperm.xlu0 %654, %v25
    %v656 = vpop.permute.xlu0 %655
    %657 = vset.pattern.permute.xlu0 2
    %658 = vperm.xlu0 %657, %v26
    %v659 = vpop.permute.xlu0 %658
    %660 = vset.pattern.permute.xlu0 2
    %661 = vperm.xlu0 %660, %v27
    %v662 = vpop.permute.xlu0 %661
    %vm663 = vcmp.eq.s32.totalorder %v35, %v617
    %vm664 = vcmp.eq.s32.totalorder %v35, %v620
    %vm665 = vcmp.eq.s32.totalorder %v35, %v623
    %vm666 = vcmp.eq.s32.totalorder %v35, %v626
    %vm667 = vcmp.eq.s32.totalorder %v35, %v629
    %vm668 = vcmp.eq.s32.totalorder %v35, %v632
    %vm669 = vcmp.eq.s32.totalorder %v35, %v635
    %vm670 = vcmp.eq.s32.totalorder %v35, %v638
    %vm671 = vcmp.eq.s32.totalorder %v35, %v641
    %vm672 = vcmp.eq.s32.totalorder %v35, %v644
    %vm673 = vcmp.eq.s32.totalorder %v35, %v647
    %vm674 = vcmp.eq.s32.totalorder %v35, %v650
    %vm675 = vcmp.eq.s32.totalorder %v35, %v653
    %vm676 = vcmp.eq.s32.totalorder %v35, %v656
    %vm677 = vcmp.eq.s32.totalorder %v35, %v659
    %vm678 = vcmp.eq.s32.totalorder %v35, %v662
    %v679 = vsel %vm663, 1, 0
    %v680 = vsel %vm664, 1, 0
    %v681 = vsel %vm665, 1, 0
    %v682 = vsel %vm666, 1, 0
    %v683 = vsel %vm667, 1, 0
    %v684 = vsel %vm668, 1, 0
    %v685 = vsel %vm669, 1, 0
    %v686 = vsel %vm670, 1, 0
    %v687 = vsel %vm671, 1, 0
    %v688 = vsel %vm672, 1, 0
    %v689 = vsel %vm673, 1, 0
    %v690 = vsel %vm674, 1, 0
    %v691 = vsel %vm675, 1, 0
    %v692 = vsel %vm676, 1, 0
    %v693 = vsel %vm677, 1, 0
    %v694 = vsel %vm678, 1, 0
    %v695 = vcvt.s32.f32 %v679
    %v696 = vcvt.s32.f32 %v680
    %v697 = vcvt.s32.f32 %v681
    %v698 = vcvt.s32.f32 %v682
    %v699 = vcvt.s32.f32 %v683
    %v700 = vcvt.s32.f32 %v684
    %v701 = vcvt.s32.f32 %v685
    %v702 = vcvt.s32.f32 %v686
    %v703 = vcvt.s32.f32 %v687
    %v704 = vcvt.s32.f32 %v688
    %v705 = vcvt.s32.f32 %v689
    %v706 = vcvt.s32.f32 %v690
    %v707 = vcvt.s32.f32 %v691
    %v708 = vcvt.s32.f32 %v692
    %v709 = vcvt.s32.f32 %v693
    %v710 = vcvt.s32.f32 %v694
    %v712 = vsel %vm132, %v695, 0
    %v715 = vsel %vm132, %v696, 0
    %v718 = vsel %vm132, %v697, 0
    %v721 = vsel %vm132, %v698, 0
    %v724 = vsel %vm132, %v699, 0
    %v727 = vsel %vm132, %v700, 0
    %v730 = vsel %vm132, %v701, 0
    %v733 = vsel %vm132, %v702, 0
    %v736 = vsel %vm132, %v703, 0
    %v739 = vsel %vm132, %v704, 0
    %v742 = vsel %vm132, %v705, 0
    %v745 = vsel %vm132, %v706, 0
    %v748 = vsel %vm132, %v707, 0
    %v751 = vsel %vm132, %v708, 0
    %v754 = vsel %vm132, %v709, 0
    %v757 = vsel %vm132, %v710, 0
    %759 = vmatprep.subr.mxu0 0.0
    %760 = vmatpush1.msra.mxu0 %v28
    %761 = vmatprep.subr.mxu0 0.0
    %762 = vmatpush1.msra.mxu0 %v29
    %763 = vmatprep.subr.mxu0 0.0
    %764 = vmatpush1.msra.mxu0 %v30
    %765 = vmatprep.subr.mxu0 0.0
    %766 = vmatpush1.msra.mxu0 %v31
    %767 = vmatprep.subr.mxu0 0.0
    %768 = vmatpush1.msra.mxu0 %v32
    %769 = vmatprep.subr.mxu0 0.0
    %770 = vmatpush1.msra.mxu0 %v33
    %771 = vmatprep.subr.mxu0 0.0
    %772 = vmatpush1.msra.mxu0 0.0
    %773 = vmatprep.subr.mxu0 0.0
    %774 = vmatpush1.msra.mxu0 0.0
    %775 = vmatprep.subr.mxu0 0.0
    %776 = vmatpush1.msra.mxu0 0.0
    %777 = vmatprep.subr.mxu0 0.0
    %778 = vmatpush1.msra.mxu0 0.0
    %779 = vmatprep.subr.mxu0 0.0
    %780 = vmatpush1.msra.mxu0 0.0
    %781 = vmatprep.subr.mxu0 0.0
    %782 = vmatpush1.msra.mxu0 0.0
    %783 = vmatprep.subr.mxu0 0.0
    %784 = vmatpush1.msra.mxu0 0.0
    %785 = vmatprep.subr.mxu0 0.0
    %786 = vmatpush1.msra.mxu0 0.0
    %787 = vmatprep.subr.mxu0 0.0
    %788 = vmatpush1.msra.mxu0 0.0
    %789 = vmatprep.subr.mxu0 0.0
    %790 = vmatpush1.msra.mxu0 0.0
    %791 = vmatprep.subr.mxu0 0.0
    %792 = vmatpush1.msra.mxu0 0.0
    %793 = vmatprep.subr.mxu0 0.0
    %794 = vmatpush1.msra.mxu0 0.0
    %795 = vmatprep.subr.mxu0 0.0
    %796 = vmatpush1.msra.mxu0 0.0
    %797 = vmatprep.subr.mxu0 0.0
    %798 = vmatpush1.msra.mxu0 0.0
    %799 = vmatprep.subr.mxu0 0.0
    %800 = vmatpush1.msra.mxu0 0.0
    %801 = vmatprep.subr.mxu0 0.0
    %802 = vmatpush1.msra.mxu0 0.0
    %803 = vmatprep.subr.mxu0 0.0
    %804 = vmatpush1.msra.mxu0 0.0
    %805 = vmatprep.subr.mxu0 0.0
    %806 = vmatpush1.msra.mxu0 0.0
    %807 = vmatprep.subr.mxu0 0.0
    %808 = vmatpush1.msra.mxu0 0.0
    %809 = vmatprep.subr.mxu0 0.0
    %810 = vmatpush1.msra.mxu0 0.0
    %811 = vmatprep.subr.mxu0 0.0
    %812 = vmatpush1.msra.mxu0 0.0
    %813 = vmatprep.subr.mxu0 0.0
    %814 = vmatpush1.msra.mxu0 0.0
    %815 = vmatprep.subr.mxu0 0.0
    %816 = vmatpush1.msra.mxu0 0.0
    %817 = vmatprep.subr.mxu0 0.0
    %818 = vmatpush1.msra.mxu0 0.0
    %819 = vmatprep.subr.mxu0 0.0
    %820 = vmatpush1.msra.mxu0 0.0
    %821 = vmatprep.subr.mxu0 0.0
    %822 = vmatpush1.msra.mxu0 0.0
    %823 = vmatprep.mubr.f32.mxu0 0.0
    %824 = vmatmul.mubr.f32.gmra.mrb[0].mxu0 %v712
    %v825 = vpop.f32.mrb[0].mxu0
    %v826 = vadd.f32 0.0, %v825
    %v827 = vpop.f32.mrb[0].mxu0
    %828 = vmatprep.mubr.f32.mxu0 0.0
    %829 = vmatmul.mubr.f32.gmra.mrb[0].mxu0 %v715
    %v830 = vpop.f32.mrb[0].mxu0
    %v831 = vadd.f32 0.0, %v830
    %v832 = vpop.f32.mrb[0].mxu0
    %833 = vmatprep.mubr.f32.mxu0 0.0
    %834 = vmatmul.mubr.f32.gmra.mrb[0].mxu0 %v718
    %v835 = vpop.f32.mrb[0].mxu0
    %v836 = vadd.f32 0.0, %v835
    %v837 = vpop.f32.mrb[0].mxu0
    %838 = vmatprep.mubr.f32.mxu0 0.0
    %839 = vmatmul.mubr.f32.gmra.mrb[0].mxu0 %v721
    %v840 = vpop.f32.mrb[0].mxu0
    %v841 = vadd.f32 0.0, %v840
    %v842 = vpop.f32.mrb[0].mxu0
    %843 = vmatprep.mubr.f32.mxu0 0.0
    %844 = vmatmul.mubr.f32.gmra.mrb[0].mxu0 %v724
    %v845 = vpop.f32.mrb[0].mxu0
    %v846 = vadd.f32 0.0, %v845
    %v847 = vpop.f32.mrb[0].mxu0
    %848 = vmatprep.mubr.f32.mxu0 0.0
    %849 = vmatmul.mubr.f32.gmra.mrb[0].mxu0 %v727
    %v850 = vpop.f32.mrb[0].mxu0
    %v851 = vadd.f32 0.0, %v850
    %v852 = vpop.f32.mrb[0].mxu0
    %853 = vmatprep.mubr.f32.mxu0 0.0
    %854 = vmatmul.mubr.f32.gmra.mrb[0].mxu0 %v730
    %v855 = vpop.f32.mrb[0].mxu0
    %v856 = vadd.f32 0.0, %v855
    %v857 = vpop.f32.mrb[0].mxu0
    %858 = vmatprep.mubr.f32.mxu0 0.0
    %859 = vmatmul.mubr.f32.gmra.mrb[0].mxu0 %v733
    %v860 = vpop.f32.mrb[0].mxu0
    %v861 = vadd.f32 0.0, %v860
    %v862 = vpop.f32.mrb[0].mxu0
    %863 = vmatprep.mubr.f32.mxu0 0.0
    %864 = vmatmul.mubr.f32.gmra.mrb[0].mxu0 %v736
    %v865 = vpop.f32.mrb[0].mxu0
    %v866 = vadd.f32 0.0, %v865
    %v867 = vpop.f32.mrb[0].mxu0
    %868 = vmatprep.mubr.f32.mxu0 0.0
    %869 = vmatmul.mubr.f32.gmra.mrb[0].mxu0 %v739
    %v870 = vpop.f32.mrb[0].mxu0
    %v871 = vadd.f32 0.0, %v870
    %v872 = vpop.f32.mrb[0].mxu0
    %873 = vmatprep.mubr.f32.mxu0 0.0
    %874 = vmatmul.mubr.f32.gmra.mrb[0].mxu0 %v742
    %v875 = vpop.f32.mrb[0].mxu0
    %v876 = vadd.f32 0.0, %v875
    %v877 = vpop.f32.mrb[0].mxu0
    %878 = vmatprep.mubr.f32.mxu0 0.0
    %879 = vmatmul.mubr.f32.gmra.mrb[0].mxu0 %v745
    %v880 = vpop.f32.mrb[0].mxu0
    %v881 = vadd.f32 0.0, %v880
    %v882 = vpop.f32.mrb[0].mxu0
    %883 = vmatprep.mubr.f32.mxu0 0.0
    %884 = vmatmul.mubr.f32.gmra.mrb[0].mxu0 %v748
    %v885 = vpop.f32.mrb[0].mxu0
    %v886 = vadd.f32 0.0, %v885
    %v887 = vpop.f32.mrb[0].mxu0
    %888 = vmatprep.mubr.f32.mxu0 0.0
    %889 = vmatmul.mubr.f32.gmra.mrb[0].mxu0 %v751
    %v890 = vpop.f32.mrb[0].mxu0
    %v891 = vadd.f32 0.0, %v890
    %v892 = vpop.f32.mrb[0].mxu0
    %893 = vmatprep.mubr.f32.mxu0 0.0
    %894 = vmatmul.mubr.f32.gmra.mrb[0].mxu0 %v754
    %v895 = vpop.f32.mrb[0].mxu0
    %v896 = vadd.f32 0.0, %v895
    %v897 = vpop.f32.mrb[0].mxu0
    %898 = vmatprep.mubr.f32.mxu0 0.0
    %899 = vmatmul.mubr.f32.gmra.mrb[0].mxu0 %v757
    %v900 = vpop.f32.mrb[0].mxu0
    %v901 = vadd.f32 0.0, %v900
    %v902 = vpop.f32.mrb[0].mxu0
    %903 = vdwg.mxu0
    %904 = vset.pattern.permute.xlu0 3
    %905 = vperm.xlu0 %904, %v12
    %v906 = vpop.permute.xlu0 %905
    %907 = vset.pattern.permute.xlu0 3
    %908 = vperm.xlu0 %907, %v13
    %v909 = vpop.permute.xlu0 %908
    %910 = vset.pattern.permute.xlu0 3
    %911 = vperm.xlu0 %910, %v14
    %v912 = vpop.permute.xlu0 %911
    %913 = vset.pattern.permute.xlu0 3
    %914 = vperm.xlu0 %913, %v15
    %v915 = vpop.permute.xlu0 %914
    %916 = vset.pattern.permute.xlu0 3
    %917 = vperm.xlu0 %916, %v16
    %v918 = vpop.permute.xlu0 %917
    %919 = vset.pattern.permute.xlu0 3
    %920 = vperm.xlu0 %919, %v17
    %v921 = vpop.permute.xlu0 %920
    %922 = vset.pattern.permute.xlu0 3
    %923 = vperm.xlu0 %922, %v18
    %v924 = vpop.permute.xlu0 %923
    %925 = vset.pattern.permute.xlu0 3
    %926 = vperm.xlu0 %925, %v19
    %v927 = vpop.permute.xlu0 %926
    %928 = vset.pattern.permute.xlu0 3
    %929 = vperm.xlu0 %928, %v20
    %v930 = vpop.permute.xlu0 %929
    %931 = vset.pattern.permute.xlu0 3
    %932 = vperm.xlu0 %931, %v21
    %v933 = vpop.permute.xlu0 %932
    %934 = vset.pattern.permute.xlu0 3
    %935 = vperm.xlu0 %934, %v22
    %v936 = vpop.permute.xlu0 %935
    %937 = vset.pattern.permute.xlu0 3
    %938 = vperm.xlu0 %937, %v23
    %v939 = vpop.permute.xlu0 %938
    %940 = vset.pattern.permute.xlu0 3
    %941 = vperm.xlu0 %940, %v24
    %v942 = vpop.permute.xlu0 %941
    %943 = vset.pattern.permute.xlu0 3
    %944 = vperm.xlu0 %943, %v25
    %v945 = vpop.permute.xlu0 %944
    %946 = vset.pattern.permute.xlu0 3
    %947 = vperm.xlu0 %946, %v26
    %v948 = vpop.permute.xlu0 %947
    %949 = vset.pattern.permute.xlu0 3
    %950 = vperm.xlu0 %949, %v27
    %v951 = vpop.permute.xlu0 %950
    %vm952 = vcmp.eq.s32.totalorder %v35, %v906
    %vm953 = vcmp.eq.s32.totalorder %v35, %v909
    %vm954 = vcmp.eq.s32.totalorder %v35, %v912
    %vm955 = vcmp.eq.s32.totalorder %v35, %v915
    %vm956 = vcmp.eq.s32.totalorder %v35, %v918
    %vm957 = vcmp.eq.s32.totalorder %v35, %v921
    %vm958 = vcmp.eq.s32.totalorder %v35, %v924
    %vm959 = vcmp.eq.s32.totalorder %v35, %v927
    %vm960 = vcmp.eq.s32.totalorder %v35, %v930
    %vm961 = vcmp.eq.s32.totalorder %v35, %v933
    %vm962 = vcmp.eq.s32.totalorder %v35, %v936
    %vm963 = vcmp.eq.s32.totalorder %v35, %v939
    %vm964 = vcmp.eq.s32.totalorder %v35, %v942
    %vm965 = vcmp.eq.s32.totalorder %v35, %v945
    %vm966 = vcmp.eq.s32.totalorder %v35, %v948
    %vm967 = vcmp.eq.s32.totalorder %v35, %v951
    %v968 = vsel %vm952, 1, 0
    %v969 = vsel %vm953, 1, 0
    %v970 = vsel %vm954, 1, 0
    %v971 = vsel %vm955, 1, 0
    %v972 = vsel %vm956, 1, 0
    %v973 = vsel %vm957, 1, 0
    %v974 = vsel %vm958, 1, 0
    %v975 = vsel %vm959, 1, 0
    %v976 = vsel %vm960, 1, 0
    %v977 = vsel %vm961, 1, 0
    %v978 = vsel %vm962, 1, 0
    %v979 = vsel %vm963, 1, 0
    %v980 = vsel %vm964, 1, 0
    %v981 = vsel %vm965, 1, 0
    %v982 = vsel %vm966, 1, 0
    %v983 = vsel %vm967, 1, 0
    %v984 = vcvt.s32.f32 %v968
    %v985 = vcvt.s32.f32 %v969
    %v986 = vcvt.s32.f32 %v970
    %v987 = vcvt.s32.f32 %v971
    %v988 = vcvt.s32.f32 %v972
    %v989 = vcvt.s32.f32 %v973
    %v990 = vcvt.s32.f32 %v974
    %v991 = vcvt.s32.f32 %v975
    %v992 = vcvt.s32.f32 %v976
    %v993 = vcvt.s32.f32 %v977
    %v994 = vcvt.s32.f32 %v978
    %v995 = vcvt.s32.f32 %v979
    %v996 = vcvt.s32.f32 %v980
    %v997 = vcvt.s32.f32 %v981
    %v998 = vcvt.s32.f32 %v982
    %v999 = vcvt.s32.f32 %v983
    %v1001 = vsel %vm132, %v984, 0
    %v1004 = vsel %vm132, %v985, 0
    %v1007 = vsel %vm132, %v986, 0
    %v1010 = vsel %vm132, %v987, 0
    %v1013 = vsel %vm132, %v988, 0
    %v1016 = vsel %vm132, %v989, 0
    %v1019 = vsel %vm132, %v990, 0
    %v1022 = vsel %vm132, %v991, 0
    %v1025 = vsel %vm132, %v992, 0
    %v1028 = vsel %vm132, %v993, 0
    %v1031 = vsel %vm132, %v994, 0
    %v1034 = vsel %vm132, %v995, 0
    %v1037 = vsel %vm132, %v996, 0
    %v1040 = vsel %vm132, %v997, 0
    %v1043 = vsel %vm132, %v998, 0
    %v1046 = vsel %vm132, %v999, 0
    %1048 = vmatprep.subr.mxu0 0.0
    %1049 = vmatpush1.msra.mxu0 %v28
    %1050 = vmatprep.subr.mxu0 0.0
    %1051 = vmatpush1.msra.mxu0 %v29
    %1052 = vmatprep.subr.mxu0 0.0
    %1053 = vmatpush1.msra.mxu0 %v30
    %1054 = vmatprep.subr.mxu0 0.0
    %1055 = vmatpush1.msra.mxu0 %v31
    %1056 = vmatprep.subr.mxu0 0.0
    %1057 = vmatpush1.msra.mxu0 %v32
    %1058 = vmatprep.subr.mxu0 0.0
    %1059 = vmatpush1.msra.mxu0 %v33
    %1060 = vmatprep.subr.mxu0 0.0
    %1061 = vmatpush1.msra.mxu0 0.0
    %1062 = vmatprep.subr.mxu0 0.0
    %1063 = vmatpush1.msra.mxu0 0.0
    %1064 = vmatprep.subr.mxu0 0.0
    %1065 = vmatpush1.msra.mxu0 0.0
    %1066 = vmatprep.subr.mxu0 0.0
    %1067 = vmatpush1.msra.mxu0 0.0
    %1068 = vmatprep.subr.mxu0 0.0
    %1069 = vmatpush1.msra.mxu0 0.0
    %1070 = vmatprep.subr.mxu0 0.0
    %1071 = vmatpush1.msra.mxu0 0.0
    %1072 = vmatprep.subr.mxu0 0.0
    %1073 = vmatpush1.msra.mxu0 0.0
    %1074 = vmatprep.subr.mxu0 0.0
    %1075 = vmatpush1.msra.mxu0 0.0
    %1076 = vmatprep.subr.mxu0 0.0
    %1077 = vmatpush1.msra.mxu0 0.0
    %1078 = vmatprep.subr.mxu0 0.0
    %1079 = vmatpush1.msra.mxu0 0.0
    %1080 = vmatprep.subr.mxu0 0.0
    %1081 = vmatpush1.msra.mxu0 0.0
    %1082 = vmatprep.subr.mxu0 0.0
    %1083 = vmatpush1.msra.mxu0 0.0
    %1084 = vmatprep.subr.mxu0 0.0
    %1085 = vmatpush1.msra.mxu0 0.0
    %1086 = vmatprep.subr.mxu0 0.0
    %1087 = vmatpush1.msra.mxu0 0.0
    %1088 = vmatprep.subr.mxu0 0.0
    %1089 = vmatpush1.msra.mxu0 0.0
    %1090 = vmatprep.subr.mxu0 0.0
    %1091 = vmatpush1.msra.mxu0 0.0
    %1092 = vmatprep.subr.mxu0 0.0
    %1093 = vmatpush1.msra.mxu0 0.0
    %1094 = vmatprep.subr.mxu0 0.0
    %1095 = vmatpush1.msra.mxu0 0.0
    %1096 = vmatprep.subr.mxu0 0.0
    %1097 = vmatpush1.msra.mxu0 0.0
    %1098 = vmatprep.subr.mxu0 0.0
    %1099 = vmatpush1.msra.mxu0 0.0
    %1100 = vmatprep.subr.mxu0 0.0
    %1101 = vmatpush1.msra.mxu0 0.0
    %1102 = vmatprep.subr.mxu0 0.0
    %1103 = vmatpush1.msra.mxu0 0.0
    %1104 = vmatprep.subr.mxu0 0.0
    %1105 = vmatpush1.msra.mxu0 0.0
    %1106 = vmatprep.subr.mxu0 0.0
    %1107 = vmatpush1.msra.mxu0 0.0
    %1108 = vmatprep.subr.mxu0 0.0
    %1109 = vmatpush1.msra.mxu0 0.0
    %1110 = vmatprep.subr.mxu0 0.0
    %1111 = vmatpush1.msra.mxu0 0.0
    %1112 = vmatprep.mubr.f32.mxu0 0.0
    %1113 = vmatmul.mubr.f32.gmra.mrb[0].mxu0 %v1001
    %v1114 = vpop.f32.mrb[0].mxu0
    %v1115 = vadd.f32 0.0, %v1114
    %v1116 = vpop.f32.mrb[0].mxu0
    %1117 = vmatprep.mubr.f32.mxu0 0.0
    %1118 = vmatmul.mubr.f32.gmra.mrb[0].mxu0 %v1004
    %v1119 = vpop.f32.mrb[0].mxu0
    %v1120 = vadd.f32 0.0, %v1119
    %v1121 = vpop.f32.mrb[0].mxu0
    %1122 = vmatprep.mubr.f32.mxu0 0.0
    %1123 = vmatmul.mubr.f32.gmra.mrb[0].mxu0 %v1007
    %v1124 = vpop.f32.mrb[0].mxu0
    %v1125 = vadd.f32 0.0, %v1124
    %v1126 = vpop.f32.mrb[0].mxu0
    %1127 = vmatprep.mubr.f32.mxu0 0.0
    %1128 = vmatmul.mubr.f32.gmra.mrb[0].mxu0 %v1010
    %v1129 = vpop.f32.mrb[0].mxu0
    %v1130 = vadd.f32 0.0, %v1129
    %v1131 = vpop.f32.mrb[0].mxu0
    %1132 = vmatprep.mubr.f32.mxu0 0.0
    %1133 = vmatmul.mubr.f32.gmra.mrb[0].mxu0 %v1013
    %v1134 = vpop.f32.mrb[0].mxu0
    %v1135 = vadd.f32 0.0, %v1134
    %v1136 = vpop.f32.mrb[0].mxu0
    %1137 = vmatprep.mubr.f32.mxu0 0.0
    %1138 = vmatmul.mubr.f32.gmra.mrb[0].mxu0 %v1016
    %v1139 = vpop.f32.mrb[0].mxu0
    %v1140 = vadd.f32 0.0, %v1139
    %v1141 = vpop.f32.mrb[0].mxu0
    %1142 = vmatprep.mubr.f32.mxu0 0.0
    %1143 = vmatmul.mubr.f32.gmra.mrb[0].mxu0 %v1019
    %v1144 = vpop.f32.mrb[0].mxu0
    %v1145 = vadd.f32 0.0, %v1144
    %v1146 = vpop.f32.mrb[0].mxu0
    %1147 = vmatprep.mubr.f32.mxu0 0.0
    %1148 = vmatmul.mubr.f32.gmra.mrb[0].mxu0 %v1022
    %v1149 = vpop.f32.mrb[0].mxu0
    %v1150 = vadd.f32 0.0, %v1149
    %v1151 = vpop.f32.mrb[0].mxu0
    %1152 = vmatprep.mubr.f32.mxu0 0.0
    %1153 = vmatmul.mubr.f32.gmra.mrb[0].mxu0 %v1025
    %v1154 = vpop.f32.mrb[0].mxu0
    %v1155 = vadd.f32 0.0, %v1154
    %v1156 = vpop.f32.mrb[0].mxu0
    %1157 = vmatprep.mubr.f32.mxu0 0.0
    %1158 = vmatmul.mubr.f32.gmra.mrb[0].mxu0 %v1028
    %v1159 = vpop.f32.mrb[0].mxu0
    %v1160 = vadd.f32 0.0, %v1159
    %v1161 = vpop.f32.mrb[0].mxu0
    %1162 = vmatprep.mubr.f32.mxu0 0.0
    %1163 = vmatmul.mubr.f32.gmra.mrb[0].mxu0 %v1031
    %v1164 = vpop.f32.mrb[0].mxu0
    %v1165 = vadd.f32 0.0, %v1164
    %v1166 = vpop.f32.mrb[0].mxu0
    %1167 = vmatprep.mubr.f32.mxu0 0.0
    %1168 = vmatmul.mubr.f32.gmra.mrb[0].mxu0 %v1034
    %v1169 = vpop.f32.mrb[0].mxu0
    %v1170 = vadd.f32 0.0, %v1169
    %v1171 = vpop.f32.mrb[0].mxu0
    %1172 = vmatprep.mubr.f32.mxu0 0.0
    %1173 = vmatmul.mubr.f32.gmra.mrb[0].mxu0 %v1037
    %v1174 = vpop.f32.mrb[0].mxu0
    %v1175 = vadd.f32 0.0, %v1174
    %v1176 = vpop.f32.mrb[0].mxu0
    %1177 = vmatprep.mubr.f32.mxu0 0.0
    %1178 = vmatmul.mubr.f32.gmra.mrb[0].mxu0 %v1040
    %v1179 = vpop.f32.mrb[0].mxu0
    %v1180 = vadd.f32 0.0, %v1179
    %v1181 = vpop.f32.mrb[0].mxu0
    %1182 = vmatprep.mubr.f32.mxu0 0.0
    %1183 = vmatmul.mubr.f32.gmra.mrb[0].mxu0 %v1043
    %v1184 = vpop.f32.mrb[0].mxu0
    %v1185 = vadd.f32 0.0, %v1184
    %v1186 = vpop.f32.mrb[0].mxu0
    %1187 = vmatprep.mubr.f32.mxu0 0.0
    %1188 = vmatmul.mubr.f32.gmra.mrb[0].mxu0 %v1046
    %v1189 = vpop.f32.mrb[0].mxu0
    %v1190 = vadd.f32 0.0, %v1189
    %v1191 = vpop.f32.mrb[0].mxu0
    %1192 = vdwg.mxu0
    %1209 = vrot.lane.b32.xlu0 %v537, 32
    %v1210 = vpop.permute.xlu0 %1209
    %1211 = vrot.lane.b32.xlu0 %v542, 32
    %v1212 = vpop.permute.xlu0 %1211
    %1213 = vrot.lane.b32.xlu0 %v547, 32
    %v1214 = vpop.permute.xlu0 %1213
    %1215 = vrot.lane.b32.xlu0 %v552, 32
    %v1216 = vpop.permute.xlu0 %1215
    %1217 = vrot.lane.b32.xlu0 %v557, 32
    %v1218 = vpop.permute.xlu0 %1217
    %1219 = vrot.lane.b32.xlu0 %v562, 32
    %v1220 = vpop.permute.xlu0 %1219
    %1221 = vrot.lane.b32.xlu0 %v567, 32
    %v1222 = vpop.permute.xlu0 %1221
    %1223 = vrot.lane.b32.xlu0 %v572, 32
    %v1224 = vpop.permute.xlu0 %1223
    %1225 = vrot.lane.b32.xlu0 %v577, 32
    %v1226 = vpop.permute.xlu0 %1225
    %1227 = vrot.lane.b32.xlu0 %v582, 32
    %v1228 = vpop.permute.xlu0 %1227
    %1229 = vrot.lane.b32.xlu0 %v587, 32
    %v1230 = vpop.permute.xlu0 %1229
    %1231 = vrot.lane.b32.xlu0 %v592, 32
    %v1232 = vpop.permute.xlu0 %1231
    %1233 = vrot.lane.b32.xlu0 %v597, 32
    %v1234 = vpop.permute.xlu0 %1233
    %1235 = vrot.lane.b32.xlu0 %v602, 32
    %v1236 = vpop.permute.xlu0 %1235
    %1237 = vrot.lane.b32.xlu0 %v607, 32
    %v1238 = vpop.permute.xlu0 %1237
    %1239 = vrot.lane.b32.xlu0 %v612, 32
    %v1240 = vpop.permute.xlu0 %1239
    %1273 = vrot.lane.b32.xlu0 %v826, 64
    %v1274 = vpop.permute.xlu0 %1273
    %1275 = vrot.lane.b32.xlu0 %v831, 64
    %v1276 = vpop.permute.xlu0 %1275
    %1277 = vrot.lane.b32.xlu0 %v836, 64
    %v1278 = vpop.permute.xlu0 %1277
    %1279 = vrot.lane.b32.xlu0 %v841, 64
    %v1280 = vpop.permute.xlu0 %1279
    %1281 = vrot.lane.b32.xlu0 %v846, 64
    %v1282 = vpop.permute.xlu0 %1281
    %1283 = vrot.lane.b32.xlu0 %v851, 64
    %v1284 = vpop.permute.xlu0 %1283
    %1285 = vrot.lane.b32.xlu0 %v856, 64
    %v1286 = vpop.permute.xlu0 %1285
    %1287 = vrot.lane.b32.xlu0 %v861, 64
    %v1288 = vpop.permute.xlu0 %1287
    %1289 = vrot.lane.b32.xlu0 %v866, 64
    %v1290 = vpop.permute.xlu0 %1289
    %1291 = vrot.lane.b32.xlu0 %v871, 64
    %v1292 = vpop.permute.xlu0 %1291
    %1293 = vrot.lane.b32.xlu0 %v876, 64
    %v1294 = vpop.permute.xlu0 %1293
    %1295 = vrot.lane.b32.xlu0 %v881, 64
    %v1296 = vpop.permute.xlu0 %1295
    %1297 = vrot.lane.b32.xlu0 %v886, 64
    %v1298 = vpop.permute.xlu0 %1297
    %1299 = vrot.lane.b32.xlu0 %v891, 64
    %v1300 = vpop.permute.xlu0 %1299
    %1301 = vrot.lane.b32.xlu0 %v896, 64
    %v1302 = vpop.permute.xlu0 %1301
    %1303 = vrot.lane.b32.xlu0 %v901, 64
    %v1304 = vpop.permute.xlu0 %1303
    %1337 = vrot.lane.b32.xlu0 %v1115, 96
    %v1338 = vpop.permute.xlu0 %1337
    %1339 = vrot.lane.b32.xlu0 %v1120, 96
    %v1340 = vpop.permute.xlu0 %1339
    %1341 = vrot.lane.b32.xlu0 %v1125, 96
    %v1342 = vpop.permute.xlu0 %1341
    %1343 = vrot.lane.b32.xlu0 %v1130, 96
    %v1344 = vpop.permute.xlu0 %1343
    %1345 = vrot.lane.b32.xlu0 %v1135, 96
    %v1346 = vpop.permute.xlu0 %1345
    %1347 = vrot.lane.b32.xlu0 %v1140, 96
    %v1348 = vpop.permute.xlu0 %1347
    %1349 = vrot.lane.b32.xlu0 %v1145, 96
    %v1350 = vpop.permute.xlu0 %1349
    %1351 = vrot.lane.b32.xlu0 %v1150, 96
    %v1352 = vpop.permute.xlu0 %1351
    %1353 = vrot.lane.b32.xlu0 %v1155, 96
    %v1354 = vpop.permute.xlu0 %1353
    %1355 = vrot.lane.b32.xlu0 %v1160, 96
    %v1356 = vpop.permute.xlu0 %1355
    %1357 = vrot.lane.b32.xlu0 %v1165, 96
    %v1358 = vpop.permute.xlu0 %1357
    %1359 = vrot.lane.b32.xlu0 %v1170, 96
    %v1360 = vpop.permute.xlu0 %1359
    %1361 = vrot.lane.b32.xlu0 %v1175, 96
    %v1362 = vpop.permute.xlu0 %1361
    %1363 = vrot.lane.b32.xlu0 %v1180, 96
    %v1364 = vpop.permute.xlu0 %1363
    %1365 = vrot.lane.b32.xlu0 %v1185, 96
    %v1366 = vpop.permute.xlu0 %1365
    %1367 = vrot.lane.b32.xlu0 %v1190, 96
    %v1368 = vpop.permute.xlu0 %1367
    %vm1385 = vcmask 261120
    %v1386 = vsel %vm1385, %v248, %v1210
    %v1387 = vsel %vm1385, %v253, %v1212
    %v1388 = vsel %vm1385, %v258, %v1214
    %v1389 = vsel %vm1385, %v263, %v1216
    %v1390 = vsel %vm1385, %v268, %v1218
    %v1391 = vsel %vm1385, %v273, %v1220
    %v1392 = vsel %vm1385, %v278, %v1222
    %v1393 = vsel %vm1385, %v283, %v1224
    %v1394 = vsel %vm1385, %v288, %v1226
    %v1395 = vsel %vm1385, %v293, %v1228
    %v1396 = vsel %vm1385, %v298, %v1230
    %v1397 = vsel %vm1385, %v303, %v1232
    %v1398 = vsel %vm1385, %v308, %v1234
    %v1399 = vsel %vm1385, %v313, %v1236
    %v1400 = vsel %vm1385, %v318, %v1238
    %v1401 = vsel %vm1385, %v323, %v1240
    %vm1402 = vcmask 523264
    %v1403 = vsel %vm1402, %v1386, %v1274
    %v1404 = vsel %vm1402, %v1387, %v1276
    %v1405 = vsel %vm1402, %v1388, %v1278
    %v1406 = vsel %vm1402, %v1389, %v1280
    %v1407 = vsel %vm1402, %v1390, %v1282
    %v1408 = vsel %vm1402, %v1391, %v1284
    %v1409 = vsel %vm1402, %v1392, %v1286
    %v1410 = vsel %vm1402, %v1393, %v1288
    %v1411 = vsel %vm1402, %v1394, %v1290
    %v1412 = vsel %vm1402, %v1395, %v1292
    %v1413 = vsel %vm1402, %v1396, %v1294
    %v1414 = vsel %vm1402, %v1397, %v1296
    %v1415 = vsel %vm1402, %v1398, %v1298
    %v1416 = vsel %vm1402, %v1399, %v1300
    %v1417 = vsel %vm1402, %v1400, %v1302
    %v1418 = vsel %vm1402, %v1401, %v1304
    %vm1419 = vcmask 785408
    %v1420 = vsel %vm1419, %v1403, %v1338
    %v1421 = vsel %vm1419, %v1404, %v1340
    %v1422 = vsel %vm1419, %v1405, %v1342
    %v1423 = vsel %vm1419, %v1406, %v1344
    %v1424 = vsel %vm1419, %v1407, %v1346
    %v1425 = vsel %vm1419, %v1408, %v1348
    %v1426 = vsel %vm1419, %v1409, %v1350
    %v1427 = vsel %vm1419, %v1410, %v1352
    %v1428 = vsel %vm1419, %v1411, %v1354
    %v1429 = vsel %vm1419, %v1412, %v1356
    %v1430 = vsel %vm1419, %v1413, %v1358
    %v1431 = vsel %vm1419, %v1414, %v1360
    %v1432 = vsel %vm1419, %v1415, %v1362
    %v1433 = vsel %vm1419, %v1416, %v1364
    %v1434 = vsel %vm1419, %v1417, %v1366
    %v1435 = vsel %vm1419, %v1418, %v1368
    %1436 = vst [vmem:[#allocation2] sm:$0xff] %v1420
    %1437 = vst [vmem:[#allocation2 + $0x8] sm:$0xff] %v1421
    %1438 = vst [vmem:[#allocation2 + $0x10] sm:$0xff] %v1422
    %1439 = vst [vmem:[#allocation2 + $0x18] sm:$0xff] %v1423
    %1440 = vst [vmem:[#allocation2 + $0x20] sm:$0xff] %v1424
    %1441 = vst [vmem:[#allocation2 + $0x28] sm:$0xff] %v1425
    %1442 = vst [vmem:[#allocation2 + $0x30] sm:$0xff] %v1426
    %1443 = vst [vmem:[#allocation2 + $0x38] sm:$0xff] %v1427
    %1444 = vst [vmem:[#allocation2 + $0x40] sm:$0xff] %v1428
    %1445 = vst [vmem:[#allocation2 + $0x48] sm:$0xff] %v1429
    %1446 = vst [vmem:[#allocation2 + $0x50] sm:$0xff] %v1430
    %1447 = vst [vmem:[#allocation2 + $0x58] sm:$0xff] %v1431
    %1448 = vst [vmem:[#allocation2 + $0x60] sm:$0xff] %v1432
    %1449 = vst [vmem:[#allocation2 + $0x68] sm:$0xff] %v1433
    %1450 = vst [vmem:[#allocation2 + $0x70] sm:$0xff] %v1434
    %1451 = vst [vmem:[#allocation2 + $0x78] sm:$0xff] %v1435
    // Predicated region
    $region10: #{tpu_custom_call.1} parent=1 // pred_check
      _
    $region11: #{tpu_custom_call.1} parent=1 // pred_check_branch
      %1453 = sbr.rel (0) target = $region13
    $region12: #{tpu_custom_call.1} parent=1 // pred_region
      %s1455 = ssub.s32 2048, 2048
      %1456 = vsyncadd [#allocation3], %s1455
      %s1457 = sshll.u32 [#allocation2], 4
      %s1458 = int_to_ptr.vmem [resolvable:$true] %s1457
      %1463 = dma.vmem_to_hbm [thread:$0]  %s1458, 2048, %s2, [#allocation3], 128, 128, 8
    $region13: #{tpu_custom_call.1} parent=1 // pred_fallthru
      _
    // Predicated region
    $region14: #{tpu_custom_call.1} parent=1 // pred_check
      _
    $region15: #{tpu_custom_call.1} parent=1 // pred_check_branch
      %1465 = sbr.rel (0) target = $region17
    $region16: #{tpu_custom_call.1} parent=1 // pred_region
      %1466 = dma.done [#allocation3], 2048
    $region17: #{tpu_custom_call.1} parent=1 // pred_fallthru
      _
    %1467 = vsyncpa [#allocation3], 1

</llo_original>
